<compile_context>
chip_gen: v5e
topology: v5e:2x2
jax: 0.10.0
libtpu: 0.0.40
codegen_flags: <defaults>
</compile_context>

<pallas_src>
import functools

import jax
import jax.numpy as jnp
from jax.experimental import pallas as pl
from jax.experimental.pallas import tpu as pltpu

LANES = 128
SUBLANES = 8


def _round_up(x, m):
    return ((x + m - 1) // m) * m


def _vmem_limit_bytes():
    cap = 64 << 20  # conservative fallback = v7x per-TC physical VMEM
    try:
        info = pltpu.get_tpu_info()
        cap = int(getattr(info, "vmem_capacity_bytes", cap))
    except Exception:
        pass
    # ~30% headroom for compiler scratch/spills; never below the 32 MiB default.
    return max(32 << 20, int(cap * 0.7))


def _choose_batch_tile(B, per_batch_bytes, vmem_limit):
    """Pick the batch tile bt and padded batch Bp (a multiple of bt).

    per_batch_bytes already accounts for double-buffered input/output blocks
    plus in-kernel f32 temporaries; the chosen tile fills ~75% of the limit.
    """
    budget = (vmem_limit * 3) // 4
    bt = max(1, min(B, budget // max(per_batch_bytes, 1)))
    if B >= 2:
        # Keep >= 4 grid steps when possible -> >= 2 per TensorCore on dual-TC
        # parts, so each core's BlockSpec pipeline overlaps DMA with compute.
        bt = min(bt, max(1, B // 4))
    steps = pl.cdiv(B, bt)
    bt = pl.cdiv(B, steps)  # even out blocks, minimize padding
    return bt, bt * steps


def _pad_batch(arr, Bp):
    B = arr.shape[0]
    if Bp == B:
        return arr
    return jnp.pad(arr, [(0, Bp - B)] + [(0, 0)] * (arr.ndim - 1))


def _use_dense_layout(L, C):
    # The lane-dense view [B, L*C/128, 128] is valid when channels tile the
    # lane dim periodically: C | 128 and 128 | L*C.
    return C >= 1 and LANES % C == 0 and (L * C) % LANES == 0


def _lane_group_reduce(v, C):
    """v: (bt, 128). Sum lanes belonging to the same channel (period C) and
    replicate the result across all 128 lanes.  log2(128/C) roll+add steps on
    the XLU (idle otherwise); direction of the circular roll is irrelevant."""
    shift = C
    while shift < LANES:
        v = v + pltpu.roll(v, shift, 1)
        shift *= 2
    return v


# ---------------------------------------------------------------------------
# Kernels
# ---------------------------------------------------------------------------

def _normalize_dense_kernel(x_ref, scale_ref, bias_ref, out_ref, stats_ref,
                            *, eps, seq_len, num_features):
    # x_ref/out_ref: (bt, K, 128) dense view of (bt, L, C); lane j holds
    # channel j % C.  scale_ref/bias_ref: (1, 128) lane-tiled.
    x = x_ref[...].astype(jnp.float32)
    mean_t = _lane_group_reduce(jnp.sum(x, axis=1), num_features)
    mean_t = mean_t / jnp.float32(seq_len)                       # (bt, 128)
    diff = x - mean_t[:, None, :]
    sumsq = _lane_group_reduce(jnp.sum(diff * diff, axis=1), num_features)
    if seq_len > 1:
        var_t = sumsq / jnp.float32(seq_len - 1)  # unbiased (ddof=1), torch default
    else:
        var_t = sumsq / jnp.float32(0.0)          # L == 1 -> NaN, matches torch
    std_t = jnp.sqrt(var_t)
    a_t = scale_ref[...].astype(jnp.float32) / (std_t + eps)     # (bt, 128)
    out = diff * a_t[:, None, :] + bias_ref[...].astype(jnp.float32)
    out_ref[...] = out.astype(out_ref.dtype)
    stats_ref[:, 0, :] = mean_t
    stats_ref[:, 1, :] = std_t


def _normalize_kernel(x_ref, scale_ref, bias_ref, out_ref, stats_ref,
                      *, eps, seq_len):
    # General fallback: (bt, L, C) block, C on lanes (possibly masked).
    x = x_ref[...].astype(jnp.float32)
    mean = jnp.mean(x, axis=1, keepdims=True)                    # (bt, 1, C)
    diff = x - mean
    sumsq = jnp.sum(diff * diff, axis=1, keepdims=True)
    if seq_len > 1:
        var = sumsq / jnp.float32(seq_len - 1)
    else:
        var = sumsq / jnp.float32(0.0)
    std = jnp.sqrt(var)
    a = scale_ref[...].astype(jnp.float32) / (std + eps)         # (bt, 1, C)
    out_ref[...] = (diff * a + bias_ref[...].astype(jnp.float32)).astype(out_ref.dtype)
    stats_ref[:, 0, :] = mean[:, 0, :]
    stats_ref[:, 1, :] = std[:, 0, :]


def _denormalize_dense_kernel(y_ref, scale_ref, bias_ref, mean_ref, std_ref,
                              out_ref):
    # y_ref/out_ref: (bt, K, 128) dense view; mean/std: (bt, 1, 128) lane-tiled;
    # scale/bias: (1, 128) lane-tiled.  Per-channel divides hoisted to the
    # (bt, 1, 128) stats row, one FMA per element on dense lanes.
    a = std_ref[...].astype(jnp.float32) / scale_ref[...].astype(jnp.float32)
    b = mean_ref[...].astype(jnp.float32) - bias_ref[...].astype(jnp.float32) * a
    y = y_ref[...].astype(jnp.float32)
    out_ref[...] = (y * a + b).astype(out_ref.dtype)


def _denormalize_kernel(y_ref, scale_ref, bias_ref, mean_ref, std_ref, out_ref):
    # General fallback: (bt, L, C) block.
    a = std_ref[...].astype(jnp.float32) / scale_ref[...].astype(jnp.float32)
    b = mean_ref[...].astype(jnp.float32) - bias_ref[...].astype(jnp.float32) * a
    y = y_ref[...].astype(jnp.float32)
    out_ref[...] = (y * a + b).astype(out_ref.dtype)


# ---------------------------------------------------------------------------
# Wrappers
# ---------------------------------------------------------------------------

def _compiler_params():
    return pltpu.CompilerParams(
        dimension_semantics=("parallel",),
        vmem_limit_bytes=_vmem_limit_bytes())


def revin_normalize(x, scale, bias, eps=1e-5):
    """x: [B, L, C]; scale, bias: [C]. Returns (out, mean [B,1,C], std [B,1,C])."""
    B, L, C = x.shape
    isz = jnp.dtype(x.dtype).itemsize
    limit = _vmem_limit_bytes()
    # TODO(synk): if a single-batch block ever exceeds VMEM (huge L*C), add an
    # L-tiled 'arbitrary' grid axis with two-pass sum / sum-of-squares.

    if _use_dense_layout(L, C):
        K = (L * C) // LANES
        reps = LANES // C
        per_b = _round_up(K, SUBLANES) * LANES * (4 * isz + 12)
        bt, Bp = _choose_batch_tile(B, per_b, limit)
        x_d = _pad_batch(x.reshape(B, K, LANES), Bp)
        scale_t = jnp.tile(scale.reshape(1, C).astype(jnp.float32), (1, reps))
        bias_t = jnp.tile(bias.reshape(1, C).astype(jnp.float32), (1, reps))
        kernel = functools.partial(_normalize_dense_kernel, eps=eps,
                                   seq_len=L, num_features=C)
        out_d, stats = pl.pallas_call(
            kernel,
            out_shape=(jax.ShapeDtypeStruct((Bp, K, LANES), x.dtype),
                       jax.ShapeDtypeStruct((Bp, 2, LANES), jnp.float32)),
            grid_spec=pltpu.PrefetchScalarGridSpec(
                num_scalar_prefetch=0,
                grid=(Bp // bt,),
                in_specs=[
                    pl.BlockSpec((bt, K, LANES), lambda b: (b, 0, 0)),
                    pl.BlockSpec((1, LANES), lambda b: (0, 0)),
                    pl.BlockSpec((1, LANES), lambda b: (0, 0)),
                ],
                out_specs=[
                    pl.BlockSpec((bt, K, LANES), lambda b: (b, 0, 0)),
                    pl.BlockSpec((bt, 2, LANES), lambda b: (b, 0, 0)),
                ],
            ),
            compiler_params=_compiler_params(),
        )(x_d, scale_t, bias_t)
        out = out_d[:B].reshape(B, L, C)
        return out, stats[:B, 0:1, :C], stats[:B, 1:2, :C]

    # General fallback path.
    per_b = _round_up(L, SUBLANES) * _round_up(C, LANES) * (4 * isz + 12)
    bt, Bp = _choose_batch_tile(B, per_b, limit)
    x_p = _pad_batch(x, Bp)
    scale2d = scale.reshape(1, C).astype(jnp.float32)
    bias2d = bias.reshape(1, C).astype(jnp.float32)
    kernel = functools.partial(_normalize_kernel, eps=eps, seq_len=L)
    out, stats = pl.pallas_call(
        kernel,
        out_shape=(jax.ShapeDtypeStruct((Bp, L, C), x.dtype),
                   jax.ShapeDtypeStruct((Bp, 2, C), jnp.float32)),
        grid_spec=pltpu.PrefetchScalarGridSpec(
            num_scalar_prefetch=0,
            grid=(Bp // bt,),
            in_specs=[
                pl.BlockSpec((bt, L, C), lambda b: (b, 0, 0)),
                pl.BlockSpec((1, C), lambda b: (0, 0)),
                pl.BlockSpec((1, C), lambda b: (0, 0)),
            ],
            out_specs=[
                pl.BlockSpec((bt, L, C), lambda b: (b, 0, 0)),
                pl.BlockSpec((bt, 2, C), lambda b: (b, 0, 0)),
            ],
        ),
        compiler_params=_compiler_params(),
    )(x_p, scale2d, bias2d)
    return out[:B], stats[:B, 0:1, :], stats[:B, 1:2, :]


def revin_denormalize(y, scale, bias, mean, std):
    """y: [B, L, C]; mean, std: [B, 1, C]; scale, bias: [C]."""
    B, L, C = y.shape
    isz = jnp.dtype(y.dtype).itemsize
    limit = _vmem_limit_bytes()

    if _use_dense_layout(L, C):
        K = (L * C) // LANES
        reps = LANES // C
        per_b = _round_up(K, SUBLANES) * LANES * (4 * isz + 12)
        bt, Bp = _choose_batch_tile(B, per_b, limit)
        y_d = _pad_batch(y.reshape(B, K, LANES), Bp)
        mean_t = _pad_batch(jnp.tile(mean.astype(jnp.float32), (1, 1, reps)), Bp)
        std_t = _pad_batch(jnp.tile(std.astype(jnp.float32), (1, 1, reps)), Bp)
        scale_t = jnp.tile(scale.reshape(1, C).astype(jnp.float32), (1, reps))
        bias_t = jnp.tile(bias.reshape(1, C).astype(jnp.float32), (1, reps))
        out_d = pl.pallas_call(
            _denormalize_dense_kernel,
            out_shape=jax.ShapeDtypeStruct((Bp, K, LANES), y.dtype),
            grid_spec=pltpu.PrefetchScalarGridSpec(
                num_scalar_prefetch=0,
                grid=(Bp // bt,),
                in_specs=[
                    pl.BlockSpec((bt, K, LANES), lambda b: (b, 0, 0)),
                    pl.BlockSpec((1, LANES), lambda b: (0, 0)),
                    pl.BlockSpec((1, LANES), lambda b: (0, 0)),
                    pl.BlockSpec((bt, 1, LANES), lambda b: (b, 0, 0)),
                    pl.BlockSpec((bt, 1, LANES), lambda b: (b, 0, 0)),
                ],
                out_specs=pl.BlockSpec((bt, K, LANES), lambda b: (b, 0, 0)),
            ),
            compiler_params=_compiler_params(),
        )(y_d, scale_t, bias_t, mean_t, std_t)
        return out_d[:B].reshape(B, L, C)

    # General fallback path.
    per_b = _round_up(L, SUBLANES) * _round_up(C, LANES) * (4 * isz + 12)
    bt, Bp = _choose_batch_tile(B, per_b, limit)
    y_p = _pad_batch(y, Bp)
    mean_p = _pad_batch(mean.astype(jnp.float32), Bp)
    std_p = _pad_batch(std.astype(jnp.float32), Bp)
    scale2d = scale.reshape(1, C).astype(jnp.float32)
    bias2d = bias.reshape(1, C).astype(jnp.float32)
    out = pl.pallas_call(
        _denormalize_kernel,
        out_shape=jax.ShapeDtypeStruct((Bp, L, C), y.dtype),
        grid_spec=pltpu.PrefetchScalarGridSpec(
            num_scalar_prefetch=0,
            grid=(Bp // bt,),
            in_specs=[
                pl.BlockSpec((bt, L, C), lambda b: (b, 0, 0)),
                pl.BlockSpec((1, C), lambda b: (0, 0)),
                pl.BlockSpec((1, C), lambda b: (0, 0)),
                pl.BlockSpec((bt, 1, C), lambda b: (b, 0, 0)),
                pl.BlockSpec((bt, 1, C), lambda b: (b, 0, 0)),
            ],
            out_specs=pl.BlockSpec((bt, L, C), lambda b: (b, 0, 0)),
        ),
        compiler_params=_compiler_params(),
    )(y_p, scale2d, bias2d, mean_p, std_p)
    return out[:B]


class ReversibleInstanceNorm:
    """JAX/Pallas port of the PyTorch reversible_instance_norm module."""

    def __init__(self, num_features, eps=1e-5):
        self.num_features = num_features
        self.eps = eps
        # deterministic init matching nn.Parameter(torch.ones / torch.zeros)
        self.scale = jnp.ones((num_features,), dtype=jnp.float32)
        self.bias = jnp.zeros((num_features,), dtype=jnp.float32)
        self.mean = None
        self.std = None

    def __call__(self, x, mode):
        if mode == "normalize":
            out, mean, std = revin_normalize(x, self.scale, self.bias, self.eps)
            self.mean = mean
            self.std = std
            return out
        elif mode == "denormalize":
            return revin_denormalize(x, self.scale, self.bias, self.mean, self.std)
        raise ValueError(mode)


def _reference_normalize(x, scale, bias, eps):
    mean = jnp.mean(x, axis=1, keepdims=True)
    std = jnp.std(x, axis=1, keepdims=True, ddof=1)
    out = (x - mean) / (std + eps) * scale + bias
    return out, mean, std


if __name__ == "__main__":
    key = jax.random.PRNGKey(0)
    k1, k2 = jax.random.split(key)

    # --- lane-dense fast path (C | 128, L*C % 128 == 0) ---
    B, L, C = 4, 32, 8
    x = jax.random.normal(k1, (B, L, C), dtype=jnp.float32)
    rin = ReversibleInstanceNorm(num_features=C, eps=1e-5)
    rin.scale = 1.0 + 0.1 * jnp.arange(C, dtype=jnp.float32)
    rin.bias = 0.05 * jnp.arange(C, dtype=jnp.float32)

    y = rin(x, "normalize")
    x_rec = rin(y, "denormalize")
    jax.block_until_ready((y, x_rec))

    y_ref, mean_ref, std_ref = _reference_normalize(x, rin.scale, rin.bias, rin.eps)
    assert jnp.allclose(y, y_ref, atol=1e-5, rtol=1e-5)
    assert jnp.allclose(rin.mean, mean_ref, atol=1e-5, rtol=1e-5)
    assert jnp.allclose(rin.std, std_ref, atol=1e-5, rtol=1e-5)
    assert jnp.allclose(x_rec, x, atol=1e-3, rtol=1e-3)

    # --- general fallback path (C does not divide 128) ---
    B2, L2, C2 = 3, 16, 5
    x2 = jax.random.normal(k2, (B2, L2, C2), dtype=jnp.float32)
    rin2 = ReversibleInstanceNorm(num_features=C2, eps=1e-5)
    y2 = rin2(x2, "normalize")
    x2_rec = rin2(y2, "denormalize")
    jax.block_until_ready((y2, x2_rec))

    y2_ref, m2_ref, s2_ref = _reference_normalize(x2, rin2.scale, rin2.bias, rin2.eps)
    assert jnp.allclose(y2, y2_ref, atol=1e-5, rtol=1e-5)
    assert jnp.allclose(rin2.mean, m2_ref, atol=1e-5, rtol=1e-5)
    assert jnp.allclose(rin2.std, s2_ref, atol=1e-5, rtol=1e-5)
    assert jnp.allclose(x2_rec, x2, atol=1e-3, rtol=1e-3)

    print("KERNEL_OK")
</pallas_src>

<mosaic_0001>
module attributes {stable_mosaic.version = 11 : i64} {
  func.func @_normalize_dense_kernel(%arg0: i32, %arg1: memref<1x2x128xf32, #tpu.memory_space<vmem>>, %arg2: memref<1x128xf32, #tpu.memory_space<vmem>>, %arg3: memref<1x128xf32, #tpu.memory_space<vmem>>, %arg4: memref<1x2x128xf32, #tpu.memory_space<vmem>>, %arg5: memref<1x2x128xf32, #tpu.memory_space<vmem>>) attributes {dimension_semantics = [#tpu.dimension_semantics<parallel>], iteration_bounds = array<i64: 4>, scalar_prefetch = 0 : i64, scratch_operands = 0 : i64, tpu.core_type = #tpu.core_type<tc>, window_params = [{transform_indices = @transform_0, window_bounds = array<i64: 1, 2, 128>}, {pipeline_mode = #tpu.pipeline_mode<synchronous>, transform_indices = @transform_1, window_bounds = array<i64: 1, 128>}, {pipeline_mode = #tpu.pipeline_mode<synchronous>, transform_indices = @transform_2, window_bounds = array<i64: 1, 128>}, {transform_indices = @transform_3, window_bounds = array<i64: 1, 2, 128>}, {transform_indices = @transform_4, window_bounds = array<i64: 1, 2, 128>}]} {
    %c0 = arith.constant 0 : index
    %c0_0 = arith.constant 0 : index
    %c0_1 = arith.constant 0 : index
    %0 = vector.load %arg1[%c0, %c0_0, %c0_1] : memref<1x2x128xf32, #tpu.memory_space<vmem>>, vector<1x2x128xf32>
    %cst = arith.constant dense<0.000000e+00> : vector<1x128xf32>
    %1 = vector.multi_reduction <add>, %0, %cst [1] : vector<1x2x128xf32> to vector<1x128xf32>
    %c8_i32 = arith.constant 8 : i32
    %2 = tpu.dynamic_rotate %1 by %c8_i32 dim 1 : vector<1x128xf32>, i32 -> vector<1x128xf32>
    %3 = arith.addf %1, %2 : vector<1x128xf32>
    %c16_i32 = arith.constant 16 : i32
    %4 = tpu.dynamic_rotate %3 by %c16_i32 dim 1 : vector<1x128xf32>, i32 -> vector<1x128xf32>
    %5 = arith.addf %3, %4 : vector<1x128xf32>
    %c32_i32 = arith.constant 32 : i32
    %6 = tpu.dynamic_rotate %5 by %c32_i32 dim 1 : vector<1x128xf32>, i32 -> vector<1x128xf32>
    %7 = arith.addf %5, %6 : vector<1x128xf32>
    %c64_i32 = arith.constant 64 : i32
    %8 = tpu.dynamic_rotate %7 by %c64_i32 dim 1 : vector<1x128xf32>, i32 -> vector<1x128xf32>
    %9 = arith.addf %7, %8 : vector<1x128xf32>
    %cst_2 = arith.constant 3.200000e+01 : f32
    %10 = vector.broadcast %cst_2 : f32 to vector<1x128xf32>
    %11 = arith.divf %9, %10 : vector<1x128xf32>
    %12 = vector.shape_cast %11 : vector<1x128xf32> to vector<1x1x128xf32>
    %13 = vector.broadcast %12 : vector<1x1x128xf32> to vector<1x2x128xf32>
    %14 = arith.subf %0, %13 : vector<1x2x128xf32>
    %15 = arith.mulf %14, %14 : vector<1x2x128xf32>
    %cst_3 = arith.constant dense<0.000000e+00> : vector<1x128xf32>
    %16 = vector.multi_reduction <add>, %15, %cst_3 [1] : vector<1x2x128xf32> to vector<1x128xf32>
    %c8_i32_4 = arith.constant 8 : i32
    %17 = tpu.dynamic_rotate %16 by %c8_i32_4 dim 1 : vector<1x128xf32>, i32 -> vector<1x128xf32>
    %18 = arith.addf %16, %17 : vector<1x128xf32>
    %c16_i32_5 = arith.constant 16 : i32
    %19 = tpu.dynamic_rotate %18 by %c16_i32_5 dim 1 : vector<1x128xf32>, i32 -> vector<1x128xf32>
    %20 = arith.addf %18, %19 : vector<1x128xf32>
    %c32_i32_6 = arith.constant 32 : i32
    %21 = tpu.dynamic_rotate %20 by %c32_i32_6 dim 1 : vector<1x128xf32>, i32 -> vector<1x128xf32>
    %22 = arith.addf %20, %21 : vector<1x128xf32>
    %c64_i32_7 = arith.constant 64 : i32
    %23 = tpu.dynamic_rotate %22 by %c64_i32_7 dim 1 : vector<1x128xf32>, i32 -> vector<1x128xf32>
    %24 = arith.addf %22, %23 : vector<1x128xf32>
    %cst_8 = arith.constant 3.100000e+01 : f32
    %25 = vector.broadcast %cst_8 : f32 to vector<1x128xf32>
    %26 = arith.divf %24, %25 : vector<1x128xf32>
    %27 = math.sqrt %26 : vector<1x128xf32>
    %c0_9 = arith.constant 0 : index
    %c0_10 = arith.constant 0 : index
    %28 = vector.load %arg2[%c0_9, %c0_10] : memref<1x128xf32, #tpu.memory_space<vmem>>, vector<1x128xf32>
    %cst_11 = arith.constant 9.99999974E-6 : f32
    %29 = vector.broadcast %cst_11 : f32 to vector<1x128xf32>
    %30 = arith.addf %27, %29 : vector<1x128xf32>
    %31 = arith.divf %28, %30 : vector<1x128xf32>
    %32 = vector.shape_cast %31 : vector<1x128xf32> to vector<1x1x128xf32>
    %33 = vector.broadcast %32 : vector<1x1x128xf32> to vector<1x2x128xf32>
    %34 = arith.mulf %14, %33 : vector<1x2x128xf32>
    %c0_12 = arith.constant 0 : index
    %c0_13 = arith.constant 0 : index
    %35 = vector.load %arg3[%c0_12, %c0_13] : memref<1x128xf32, #tpu.memory_space<vmem>>, vector<1x128xf32>
    %36 = vector.shape_cast %35 : vector<1x128xf32> to vector<1x1x128xf32>
    %37 = vector.broadcast %36 : vector<1x1x128xf32> to vector<1x2x128xf32>
    %38 = arith.addf %34, %37 : vector<1x2x128xf32>
    %c0_14 = arith.constant 0 : index
    %c0_15 = arith.constant 0 : index
    %c0_16 = arith.constant 0 : index
    %39 = vector.load %arg4[%c0_14, %c0_15, %c0_16] : memref<1x2x128xf32, #tpu.memory_space<vmem>>, vector<1x2x128xf32>
    tpu.vector_store %arg4[%c0_14, %c0_15, %c0_16], %38 {strides = array<i32>} : memref<1x2x128xf32, #tpu.memory_space<vmem>>, vector<1x2x128xf32>,
    %c0_17 = arith.constant 0 : index
    %c0_18 = arith.constant 0 : index
    %c0_19 = arith.constant 0 : index
    %40 = vector.load %arg5[%c0_17, %c0_18, %c0_19] : memref<1x2x128xf32, #tpu.memory_space<vmem>>, vector<1x1x128xf32>
    %41 = vector.shape_cast %40 : vector<1x1x128xf32> to vector<1x128xf32>
    %42 = vector.shape_cast %11 : vector<1x128xf32> to vector<1x1x128xf32>
    tpu.vector_store %arg5[%c0_17, %c0_18, %c0_19], %42 {strides = array<i32>} : memref<1x2x128xf32, #tpu.memory_space<vmem>>, vector<1x1x128xf32>,
    %c0_20 = arith.constant 0 : index
    %c1 = arith.constant 1 : index
    %c0_21 = arith.constant 0 : index
    %43 = vector.load %arg5[%c0_20, %c1, %c0_21] : memref<1x2x128xf32, #tpu.memory_space<vmem>>, vector<1x1x128xf32>
    %44 = vector.shape_cast %43 : vector<1x1x128xf32> to vector<1x128xf32>
    %45 = vector.shape_cast %27 : vector<1x128xf32> to vector<1x1x128xf32>
    tpu.vector_store %arg5[%c0_20, %c1, %c0_21], %45 {strides = array<i32>} : memref<1x2x128xf32, #tpu.memory_space<vmem>>, vector<1x1x128xf32>,
    return
  }
  func.func @transform_0(%arg0: i32) -> (i32, i32, i32) {
    %c0_i32 = arith.constant 0 : i32
    %c0_i32_0 = arith.constant 0 : i32
    %c0_i32_1 = arith.constant 0 : i32
    return %arg0, %c0_i32, %c0_i32_0 : i32, i32, i32
  }
  func.func @transform_1(%arg0: i32) -> (i32, i32) {
    %c0_i32 = arith.constant 0 : i32
    %c0_i32_0 = arith.constant 0 : i32
    %c0_i32_1 = arith.constant 0 : i32
    return %c0_i32, %c0_i32_0 : i32, i32
  }
  func.func @transform_2(%arg0: i32) -> (i32, i32) {
    %c0_i32 = arith.constant 0 : i32
    %c0_i32_0 = arith.constant 0 : i32
    %c0_i32_1 = arith.constant 0 : i32
    return %c0_i32, %c0_i32_0 : i32, i32
  }
  func.func @transform_3(%arg0: i32) -> (i32, i32, i32) {
    %c0_i32 = arith.constant 0 : i32
    %c0_i32_0 = arith.constant 0 : i32
    %c0_i32_1 = arith.constant 0 : i32
    return %arg0, %c0_i32, %c0_i32_0 : i32, i32, i32
  }
  func.func @transform_4(%arg0: i32) -> (i32, i32, i32) {
    %c0_i32 = arith.constant 0 : i32
    %c0_i32_0 = arith.constant 0 : i32
    %c0_i32_1 = arith.constant 0 : i32
    return %arg0, %c0_i32, %c0_i32_0 : i32, i32, i32
  }
}

</mosaic_0001>

<llo_original>
// kernel: tpu_custom_call.1
$region0: #{tpu_custom_call.1}
  #allocation0 [shape = 'u32[]', space=smem, size = 0x4, offset = 0x4, fixed_abs, tag = 'smem constant byte address 0x4 - core index']
  #allocation1 [shape = 'u32[72,128]{1,0:T(1,128)}', space=vmem, size = 0x9000, scoped, tag = 'internal scratch']
  %s0 = inlined_call_operand.hbm [shape: f32[4,2,128], index: 0, kind: input, shape index: {}]
  %s1 = inlined_call_operand.hbm [shape: f32[1,128], index: 1, kind: input, shape index: {}]
  %s2 = inlined_call_operand.vmem [shape: f32[1,128], index: 2, kind: input, shape index: {}]
  %s3 = inlined_call_operand.hbm [shape: f32[4,2,128], index: 3, kind: output, shape index: {0}]
  %s4 = inlined_call_operand.hbm [shape: f32[4,2,128], index: 4, kind: output, shape index: {1}]
  %5 = xla_tuple %s3, %s4
  %s6 = sld [smem:[#allocation0]]
  $region61: #{tpu_custom_call.1} parent=0
    _
  %s8 = ssub.s32 1, %s6
  %s9 = scalar_select 0, %s8, %s6
  $region1: #{tpu_custom_call.1} parent=0
    #allocation2 [shape = 'u8[2048]{0}', space=vmem, size = 0x800, scoped, tag = 'input window, operand 0']
    #allocation3 [shape = 's32[2]{0}', space=sflag, size = 0x8, scoped, tag = 'scoped memory for tpu_custom_call.1']
    #allocation4 [shape = 's32[2]{0}', space=sflag, size = 0x8, scoped, tag = 'scoped memory for tpu_custom_call.1']
    #allocation5 [shape = 'u8[512]{0}', space=vmem, size = 0x400, scoped, tag = 'input window, operand 1, single buffered']
    #allocation6 [shape = 's32[1]{0}', space=sflag, size = 0x4, scoped, tag = 'scoped memory for tpu_custom_call.1']
    #allocation7 [shape = 'u8[2048]{0}', space=vmem, size = 0x800, scoped, tag = 'output window, operand 0']
    #allocation8 [shape = 'u8[2048]{0}', space=vmem, size = 0x800, scoped, tag = 'output window, operand 1']
    #allocation9 [shape = 's32[2]{0}', space=sflag, size = 0x8, scoped, tag = 'scoped memory for tpu_custom_call.1']
    %10 = vsyncpa [#allocation3], 0
    %s11 = scalar_lea.sflag [#allocation3], 1
    %12 = vsyncpa %s11, 0
    %13 = vsyncpa [#allocation6], 0
    %14 = vsyncpa [#allocation4], 0
    %s15 = scalar_lea.sflag [#allocation4], 1
    %16 = vsyncpa %s15, 0
    %17 = vsyncpa [#allocation9], 0
    %s18 = scalar_lea.sflag [#allocation9], 1
    %19 = vsyncpa %s18, 0
    loop: start=0, step=1, limit=6
    $region2: #{tpu_custom_call.1} parent=1 // loop_pre_header
      _
    $region3: #{tpu_custom_call.1} parent=1 // loop_header
      %s21 = sphi 0, %s25
      %p22 = scmp.ge.s32.totalorder %s21, 6
      %s31 = sphi 0, %s33
      %s34 = sphi 0, %s31
      %s35 = sphi 0, %s34
      %s51 = sphi 0, %s35
      %s55 = sphi 0, %s55
      %s57 = sphi 0, %s55
      %s58 = sphi 0, %s57
      %s72 = sphi 0, %s58
      %s76 = sphi 0, %s76
      %s78 = sphi 0, %s76
      %s79 = sphi 0, %s78
      %s93 = sphi 0, %s79
      %s99 = sphi 0, %s101
      %s102 = sphi 0, %s99
      %s103 = sphi 0, %s102
      %s119 = sphi 0, %s103
      %s125 = sphi 0, %s127
      %s128 = sphi 0, %s125
      %s129 = sphi 0, %s128
      %s145 = sphi 0, %s129
    $region4: #{tpu_custom_call.1} parent=1 // loop_header_branch
      %24 = sbr.rel (%p22) target = $region8
    $region5: #{tpu_custom_call.1} parent=1 // loop_body
      %s26 = ssub.s32 %s21, 1
      %s27 = ssub.s32 %s21, 2
      %s28 = sadd.s32 %s21, 1
      %s29 = ssub.s32 %s21, %s28
      %p30 = scmp.eq.s32.totalorder %s29, 0
      %s32 = sadd.s32 %s31, 1
      %s33 = scalar_select %p30, %s31, %s32
      %p36 = pneg %p30
      %p37 = scmp.eq.s32.totalorder %s21, 3
      %p38 = por %p36, %p37
      %p39 = scmp.ne.s32.totalorder %s31, %s34
      %p40 = scmp.eq.s32.totalorder %s21, 0
      %p41 = por %p39, %p40
      %p42 = scmp.ne.s32.totalorder %s31, %s34
      %p43 = scmp.eq.s32.totalorder %s26, 3
      %p44 = por %p42, %p43
      %p45 = scmp.ne.s32.totalorder %s34, %s35
      %p46 = scmp.eq.s32.totalorder %s26, 0
      %p47 = por %p45, %p46
      %p48 = scmp.ne.s32.totalorder %s34, %s35
      %p49 = scmp.eq.s32.totalorder %s27, 3
      %p50 = por %p48, %p49
      %p52 = scmp.ne.s32.totalorder %s35, %s51
      %p53 = scmp.eq.s32.totalorder %s27, 0
      %p54 = por %p52, %p53
      %s56 = sadd.s32 %s55, 1
      %p59 = scmp.eq.s32.totalorder %s21, 3
      %p60 = scmp.ne.s32.totalorder %s55, %s57
      %p61 = scmp.eq.s32.totalorder %s21, 0
      %p62 = por %p60, %p61
      %p63 = scmp.ne.s32.totalorder %s55, %s57
      %p64 = scmp.eq.s32.totalorder %s26, 3
      %p65 = por %p63, %p64
      %p66 = scmp.ne.s32.totalorder %s57, %s58
      %p67 = scmp.eq.s32.totalorder %s26, 0
      %p68 = por %p66, %p67
      %p69 = scmp.ne.s32.totalorder %s57, %s58
      %p70 = scmp.eq.s32.totalorder %s27, 3
      %p71 = por %p69, %p70
      %p73 = scmp.ne.s32.totalorder %s58, %s72
      %p74 = scmp.eq.s32.totalorder %s27, 0
      %p75 = por %p73, %p74
      %s77 = sadd.s32 %s76, 1
      %p80 = scmp.eq.s32.totalorder %s21, 3
      %p81 = scmp.ne.s32.totalorder %s76, %s78
      %p82 = scmp.eq.s32.totalorder %s21, 0
      %p83 = por %p81, %p82
      %p84 = scmp.ne.s32.totalorder %s76, %s78
      %p85 = scmp.eq.s32.totalorder %s26, 3
      %p86 = por %p84, %p85
      %p87 = scmp.ne.s32.totalorder %s78, %s79
      %p88 = scmp.eq.s32.totalorder %s26, 0
      %p89 = por %p87, %p88
      %p90 = scmp.ne.s32.totalorder %s78, %s79
      %p91 = scmp.eq.s32.totalorder %s27, 3
      %p92 = por %p90, %p91
      %p94 = scmp.ne.s32.totalorder %s79, %s93
      %p95 = scmp.eq.s32.totalorder %s27, 0
      %p96 = por %p94, %p95
      %s97 = ssub.s32 %s21, %s28
      %p98 = scmp.eq.s32.totalorder %s97, 0
      %s100 = sadd.s32 %s99, 1
      %s101 = scalar_select %p98, %s99, %s100
      %p104 = pneg %p98
      %p105 = scmp.eq.s32.totalorder %s21, 3
      %p106 = por %p104, %p105
      %p107 = scmp.ne.s32.totalorder %s99, %s102
      %p108 = scmp.eq.s32.totalorder %s21, 0
      %p109 = por %p107, %p108
      %p110 = scmp.ne.s32.totalorder %s99, %s102
      %p111 = scmp.eq.s32.totalorder %s26, 3
      %p112 = por %p110, %p111
      %p113 = scmp.ne.s32.totalorder %s102, %s103
      %p114 = scmp.eq.s32.totalorder %s26, 0
      %p115 = por %p113, %p114
      %p116 = scmp.ne.s32.totalorder %s102, %s103
      %p117 = scmp.eq.s32.totalorder %s27, 3
      %p118 = por %p116, %p117
      %p120 = scmp.ne.s32.totalorder %s103, %s119
      %p121 = scmp.eq.s32.totalorder %s27, 0
      %p122 = por %p120, %p121
      %s123 = ssub.s32 %s21, %s28
      %p124 = scmp.eq.s32.totalorder %s123, 0
      %s126 = sadd.s32 %s125, 1
      %s127 = scalar_select %p124, %s125, %s126
      %p130 = pneg %p124
      %p131 = scmp.eq.s32.totalorder %s21, 3
      %p132 = por %p130, %p131
      %p133 = scmp.ne.s32.totalorder %s125, %s128
      %p134 = scmp.eq.s32.totalorder %s21, 0
      %p135 = por %p133, %p134
      %p136 = scmp.ne.s32.totalorder %s125, %s128
      %p137 = scmp.eq.s32.totalorder %s26, 3
      %p138 = por %p136, %p137
      %p139 = scmp.ne.s32.totalorder %s128, %s129
      %p140 = scmp.eq.s32.totalorder %s26, 0
      %p141 = por %p139, %p140
      %p142 = scmp.ne.s32.totalorder %s128, %s129
      %p143 = scmp.eq.s32.totalorder %s27, 3
      %p144 = por %p142, %p143
      %p146 = scmp.ne.s32.totalorder %s129, %s145
      %p147 = scmp.eq.s32.totalorder %s27, 0
      %p148 = por %p146, %p147
      %p149 = scmp.le.s32.totalorder 1, %s21
      %p150 = scmp.lt.s32.totalorder %s21, 5
      %p151 = pnand %p149, %p150
      %p152 = pneg %p151
      // Predicated region
      $region9: #{tpu_custom_call.1} parent=5 // pred_check
        _
      $region10: #{tpu_custom_call.1} parent=5 // pred_check_branch
        %154 = sbr.rel (%p151) target = $region12
      $region11: #{tpu_custom_call.1} parent=5 // pred_region
        %s155 = ssub.s32 %s21, 1
        // Predicated region
        $region13: #{tpu_custom_call.1} parent=11 // pred_check
          %p156 = pneg %p68
        $region14: #{tpu_custom_call.1} parent=11 // pred_check_branch
          %158 = sbr.rel (%p156) target = $region16
        $region15: #{tpu_custom_call.1} parent=11 // pred_region
          %160 = vsyncadd [#allocation6], 0
          %s162 = sshll.u32 %s1, 4
          %s163 = int_to_ptr.hbm [resolvable:$true] %s162
          %s164 = sshll.u32 [#allocation5], 4
          %s165 = int_to_ptr.vmem [resolvable:$true] %s164
          %167 = dma.hbm_to_vmem [thread:$0]  %s163, 16, %s165, [#allocation6]
        $region16: #{tpu_custom_call.1} parent=11 // pred_fallthru
          _
        // Predicated region
        $region17: #{tpu_custom_call.1} parent=11 // pred_check
          %p168 = pneg %p89
        $region18: #{tpu_custom_call.1} parent=11 // pred_check_branch
          %170 = sbr.rel (%p168) target = $region20
        $region19: #{tpu_custom_call.1} parent=11 // pred_region
          _
        $region20: #{tpu_custom_call.1} parent=11 // pred_fallthru
          _
      $region12: #{tpu_custom_call.1} parent=5 // pred_fallthru
        _
      %p171 = scmp.lt.s32.totalorder %s21, 4
      // Predicated region
      $region21: #{tpu_custom_call.1} parent=5 // pred_check
        %p172 = pneg %p171
      $region22: #{tpu_custom_call.1} parent=5 // pred_check_branch
        %174 = sbr.rel (%p172) target = $region24
      $region23: #{tpu_custom_call.1} parent=5 // pred_region
        // Predicated region
        $region25: #{tpu_custom_call.1} parent=23 // pred_check
          %p175 = pneg %p41
        $region26: #{tpu_custom_call.1} parent=23 // pred_check_branch
          %177 = sbr.rel (%p175) target = $region28
        $region27: #{tpu_custom_call.1} parent=23 // pred_region
          %s178 = sand.u32 %s31, 1
          %s179 = scalar_lea.sflag [#allocation3], %s178
          %s180 = sand.u32 %s31, 1
          %s181 = smul.addr %s180, 2
          %s182 = scalar_lea.vmem [#allocation2], %s181
          %184 = vsyncadd %s179, 0
          %s185 = smul.addr %s21, 2
          %s186 = scalar_lea.hbm %s0, %s185
          %s188 = sshll.u32 %s186, 4
          %s189 = int_to_ptr.hbm [resolvable:$true] %s188
          %s190 = sshll.u32 %s182, 4
          %s191 = int_to_ptr.vmem [resolvable:$true] %s190
          %193 = dma.hbm_to_vmem [thread:$0]  %s189, 32, %s191, %s179
        $region28: #{tpu_custom_call.1} parent=23 // pred_fallthru
          _
      $region24: #{tpu_custom_call.1} parent=5 // pred_fallthru
        _
      %p194 = scmp.le.s32.totalorder 1, %s21
      %p195 = scmp.lt.s32.totalorder %s21, 5
      %p196 = pnand %p194, %p195
      %p197 = pneg %p196
      // Predicated region
      $region29: #{tpu_custom_call.1} parent=5 // pred_check
        _
      $region30: #{tpu_custom_call.1} parent=5 // pred_check_branch
        %199 = sbr.rel (%p196) target = $region32
      $region31: #{tpu_custom_call.1} parent=5 // pred_region
        %s200 = ssub.s32 %s21, 1
        %s201 = sand.u32 %s34, 1
        %s202 = scalar_lea.sflag [#allocation3], %s201
        %s203 = sand.u32 %s34, 1
        %s204 = smul.addr %s203, 2
        %s205 = scalar_lea.vmem [#allocation2], %s204
        // Predicated region
        $region33: #{tpu_custom_call.1} parent=31 // pred_check
          %p206 = pneg %p47
        $region34: #{tpu_custom_call.1} parent=31 // pred_check_branch
          %208 = sbr.rel (%p206) target = $region36
        $region35: #{tpu_custom_call.1} parent=31 // pred_region
          %210 = dma.done %s202, 32
        $region36: #{tpu_custom_call.1} parent=31 // pred_fallthru
          _
        // Predicated region
        $region37: #{tpu_custom_call.1} parent=31 // pred_check
          %p211 = pneg %p68
        $region38: #{tpu_custom_call.1} parent=31 // pred_check_branch
          %213 = sbr.rel (%p211) target = $region40
        $region39: #{tpu_custom_call.1} parent=31 // pred_region
          %215 = dma.done [#allocation6], 16
        $region40: #{tpu_custom_call.1} parent=31 // pred_fallthru
          _
        %s216 = sand.u32 %s34, 1
        %s217 = scalar_lea.sflag [#allocation3], %s216
        %s218 = sand.u32 %s34, 1
        %s219 = smul.addr %s218, 2
        %s220 = scalar_lea.vmem [#allocation2], %s219
        %p221 = pneg %p47
        %p222 = pneg %p44
        %p223 = pneg %p68
        %p224 = pneg %p65
        %p225 = pneg %p89
        %p226 = pneg %p86
        %p227 = pneg %p115
        %p228 = pneg %p112
        %s229 = sand.u32 %s102, 1
        %s230 = scalar_lea.sflag [#allocation4], %s229
        %s231 = sand.u32 %s102, 1
        %s232 = smul.addr %s231, 2
        %s233 = scalar_lea.vmem [#allocation7], %s232
        %p234 = pneg %p141
        %p235 = pneg %p138
        %s236 = sand.u32 %s128, 1
        %s237 = scalar_lea.sflag [#allocation9], %s236
        %s238 = sand.u32 %s128, 1
        %s239 = smul.addr %s238, 2
        %s240 = scalar_lea.vmem [#allocation8], %s239
        %v241 = vld [vmem:[%s205] sm:$0x3]
        %vm242 = vcmask 1041408
        %v243 = vsel %vm242, %v241, 0.0
        %v244 = vrot.slane %v243, 4
        %v245 = vadd.f32 %v243, %v244
        %v246 = vrot.slane %v245, 2
        %v247 = vadd.f32 %v245, %v246
        %v248 = vrot.slane %v247, 1
        %v249 = vadd.f32 %v247, %v248
        %250 = vrot.lane.b32.xlu0 %v249, 8
        %v251 = vpop.permute.xlu0 %250
        %v252 = vadd.f32 %v249, %v251
        %253 = vrot.lane.b32.xlu0 %v252, 16
        %v254 = vpop.permute.xlu0 %253
        %v255 = vadd.f32 %v252, %v254
        %256 = vrot.lane.b32.xlu0 %v255, 32
        %v257 = vpop.permute.xlu0 %256
        %v258 = vadd.f32 %v255, %v257
        %259 = vrot.lane.b32.xlu0 %v258, 64
        %v260 = vpop.permute.xlu0 %259
        %v261 = vadd.f32 %v258, %v260
        %v262 = vrcp.pop 32.0
        %v263 = vmul.f32 32.0, %v262
        %v264 = vsub.f32 1.0, %v263
        %v265 = vmul.f32 %v262, %v264
        %v266 = vadd.f32 %v262, %v265
        %vm267 = vweird.f32 %v262
        %v268 = vsel %vm267, %v262, %v266
        %v269 = vmul.f32 %v261, %v268
        %v270 = vperm.slane %v269, 0
        %v271 = vsub.f32 %v241, %v270
        %v272 = vmul.f32 %v271, %v271
        %v273 = vsel %vm242, %v272, 0.0
        %v274 = vrot.slane %v273, 4
        %v275 = vadd.f32 %v273, %v274
        %v276 = vrot.slane %v275, 2
        %v277 = vadd.f32 %v275, %v276
        %v278 = vrot.slane %v277, 1
        %v279 = vadd.f32 %v277, %v278
        %280 = vrot.lane.b32.xlu0 %v279, 8
        %v281 = vpop.permute.xlu0 %280
        %v282 = vadd.f32 %v279, %v281
        %283 = vrot.lane.b32.xlu0 %v282, 16
        %v284 = vpop.permute.xlu0 %283
        %v285 = vadd.f32 %v282, %v284
        %286 = vrot.lane.b32.xlu0 %v285, 32
        %v287 = vpop.permute.xlu0 %286
        %v288 = vadd.f32 %v285, %v287
        %289 = vrot.lane.b32.xlu0 %v288, 64
        %v290 = vpop.permute.xlu0 %289
        %v291 = vadd.f32 %v288, %v290
        %v292 = vrcp.pop 31.0
        %v293 = vmul.f32 31.0, %v292
        %v294 = vsub.f32 1.0, %v293
        %v295 = vmul.f32 %v292, %v294
        %v296 = vadd.f32 %v292, %v295
        %vm297 = vweird.f32 %v292
        %v298 = vsel %vm297, %v292, %v296
        %v299 = vmul.f32 %v291, %v298
        %v300 = vrsqrt.pop %v299
        %v301 = vmul.f32 %v300, %v299
        %v302 = vmul.f32 %v301, %v300
        %v303 = vmul.f32 0.5, %v302
        %v304 = vsub.f32 1.5, %v303
        %v305 = vmul.f32 %v300, %v304
        %v306 = vmul.f32 %v299, %v305
        %vm307 = vcmp.eq.f32.partialorder %v299, inf
        %v308 = vsel %vm307, %v299, %v306
        %vm309 = vcmp.eq.f32.partialorder %v299, 0.0
        %v310 = vand.u32 %v299, 2147483648
        %v311 = vsel %vm309, %v310, %v308
        %v312 = vld [vmem:[#allocation5] sm:$0x1]
        %v313 = vadd.f32 %v311, 1e-05
        %v314 = vrcp.pop %v313
        %v315 = vmul.f32 %v313, %v314
        %v316 = vsub.f32 1.0, %v315
        %v317 = vmul.f32 %v314, %v316
        %v318 = vadd.f32 %v314, %v317
        %vm319 = vweird.f32 %v313
        %vm320 = vweird.f32 %v314
        %vm321 = vmor %vm319, %vm320
        %v322 = vsel %vm321, %v314, %v318
        %v323 = vand.u32 2147483647, %v313
        %vm324 = vcmp.eq.f32.partialorder %v323, 8.507059e+37
        %v325 = vand.u32 %v313, 2147483648
        %v326 = vor.u32 1.1754944e-38, %v325
        %v327 = vsel %vm324, %v326, %v322
        %v328 = vmul.f32 %v312, %v327
        %v330 = vperm.slane %v328, 0
        %v332 = vmul.f32 %v271, %v330
        %v333 = vld [vmem:[%s2] sm:$0x1]
        %v335 = vperm.slane %v333, 0
        %v337 = vadd.f32 %v332, %v335
        %338 = vst [vmem:[%s233] sm:$0x3] %v337
        %339 = vst [vmem:[%s240] sm:$0x1] %v269
        %340 = vst [vmem:[%s240 + $0x1] sm:$0x1] %v311
        %s341 = sand.u32 %s102, 1
        %s342 = scalar_lea.sflag [#allocation4], %s341
        %s343 = sand.u32 %s102, 1
        %s344 = smul.addr %s343, 2
        %s345 = scalar_lea.vmem [#allocation7], %s344
        %s346 = sand.u32 %s128, 1
        %s347 = scalar_lea.sflag [#allocation9], %s346
        %s348 = sand.u32 %s128, 1
        %s349 = smul.addr %s348, 2
        %s350 = scalar_lea.vmem [#allocation8], %s349
        // Predicated region
        $region41: #{tpu_custom_call.1} parent=31 // pred_check
          %p351 = pneg %p112
        $region42: #{tpu_custom_call.1} parent=31 // pred_check_branch
          %353 = sbr.rel (%p351) target = $region44
        $region43: #{tpu_custom_call.1} parent=31 // pred_region
          %355 = vsyncadd %s342, 0
          %s356 = smul.addr %s26, 2
          %s357 = scalar_lea.hbm %s3, %s356
          %s359 = sshll.u32 %s345, 4
          %s360 = int_to_ptr.vmem [resolvable:$true] %s359
          %s361 = sshll.u32 %s357, 4
          %s362 = int_to_ptr.hbm [resolvable:$true] %s361
          %364 = dma.vmem_to_hbm [thread:$0]  %s360, 32, %s362, %s342
        $region44: #{tpu_custom_call.1} parent=31 // pred_fallthru
          _
        // Predicated region
        $region45: #{tpu_custom_call.1} parent=31 // pred_check
          %p365 = pneg %p138
        $region46: #{tpu_custom_call.1} parent=31 // pred_check_branch
          %367 = sbr.rel (%p365) target = $region48
        $region47: #{tpu_custom_call.1} parent=31 // pred_region
          %369 = vsyncadd %s347, 0
          %s370 = smul.addr %s26, 2
          %s371 = scalar_lea.hbm %s4, %s370
          %s373 = sshll.u32 %s350, 4
          %s374 = int_to_ptr.vmem [resolvable:$true] %s373
          %s375 = sshll.u32 %s371, 4
          %s376 = int_to_ptr.hbm [resolvable:$true] %s375
          %378 = dma.vmem_to_hbm [thread:$0]  %s374, 32, %s376, %s347
        $region48: #{tpu_custom_call.1} parent=31 // pred_fallthru
          _
      $region32: #{tpu_custom_call.1} parent=5 // pred_fallthru
        _
      %p379 = scmp.le.s32.totalorder 2, %s21
      // Predicated region
      $region49: #{tpu_custom_call.1} parent=5 // pred_check
        %p380 = pneg %p379
      $region50: #{tpu_custom_call.1} parent=5 // pred_check_branch
        %382 = sbr.rel (%p380) target = $region52
      $region51: #{tpu_custom_call.1} parent=5 // pred_region
        %s383 = ssub.s32 %s21, 2
        // Predicated region
        $region53: #{tpu_custom_call.1} parent=51 // pred_check
          %p384 = pneg %p118
        $region54: #{tpu_custom_call.1} parent=51 // pred_check_branch
          %386 = sbr.rel (%p384) target = $region56
        $region55: #{tpu_custom_call.1} parent=51 // pred_region
          %s387 = sand.u32 %s103, 1
          %s388 = scalar_lea.sflag [#allocation4], %s387
          %s389 = sand.u32 %s103, 1
          %s390 = smul.addr %s389, 2
          %s391 = scalar_lea.vmem [#allocation7], %s390
          %393 = dma.done %s388, 32
        $region56: #{tpu_custom_call.1} parent=51 // pred_fallthru
          _
        // Predicated region
        $region57: #{tpu_custom_call.1} parent=51 // pred_check
          %p394 = pneg %p144
        $region58: #{tpu_custom_call.1} parent=51 // pred_check_branch
          %396 = sbr.rel (%p394) target = $region60
        $region59: #{tpu_custom_call.1} parent=51 // pred_region
          %s397 = sand.u32 %s129, 1
          %s398 = scalar_lea.sflag [#allocation9], %s397
          %s399 = sand.u32 %s129, 1
          %s400 = smul.addr %s399, 2
          %s401 = scalar_lea.vmem [#allocation8], %s400
          %403 = dma.done %s398, 32
        $region60: #{tpu_custom_call.1} parent=51 // pred_fallthru
          _
      $region52: #{tpu_custom_call.1} parent=5 // pred_fallthru
        _
    $region6: #{tpu_custom_call.1} parent=1 // loop_footer
      %s25 = sadd.s32 1, %s21
    $region7: #{tpu_custom_call.1} parent=1 // loop_footer_branch
      %20 = sbr.rel target = $region3
    $region8: #{tpu_custom_call.1} parent=1 // loop_exit
      _
    %404 = vsyncpa [#allocation3], 1
    %s405 = scalar_lea.sflag [#allocation3], 1
    %406 = vsyncpa %s405, 1
    %407 = vsyncpa [#allocation6], 1
    %408 = vsyncpa [#allocation4], 1
    %s409 = scalar_lea.sflag [#allocation4], 1
    %410 = vsyncpa %s409, 1
    %411 = vsyncpa [#allocation9], 1
    %s412 = scalar_lea.sflag [#allocation9], 1
    %413 = vsyncpa %s412, 1

</llo_original>
